<compile_context>
chip_gen: v7x
topology: tpu7x:2x2x1
jax: 0.10.0
libtpu: 0.0.40
codegen_flags: <defaults>
</compile_context>

<pallas_src>
import math

import jax
import jax.numpy as jnp
from jax.experimental import pallas as pl
from jax.experimental.pallas import tpu as pltpu

# ---- module constants (scaled-down synthetic sizes) -------------------------
BERT_DIM = 32            # stand-in for 768
LSTM_H = BERT_DIM // 2   # bidirectional LSTM hidden per direction (= bert_dim / 2)
HIDDEN_DIM = 256         # module constant, only used for the 1/sqrt(hidden_dim) scaling
DROPOUT_P = 0.4          # F.dropout(p=0.4) -- training=True is the F.dropout default
MAX_SEQ_LEN = 8
BATCH = 2
VOCAB = 64


# =============================================================================
# Fused kernel: bi-LSTM (PyTorch gate order i,f,g,o) + token attention scoring
#               + masked softmax + attention pooling + ELU + dropout
# =============================================================================
def _ernie_fused_kernel(x_ref, wx_ref, wh_ref, b_ref, wq_ref, bias_ref, drop_ref,
                        out_ref, gx_ref, ef_ref, er_ref):
    # x_ref:    (T, 2N, D) bf16  rows [0:N] forward-order inputs, [N:2N] reverse-order
    # wx_ref:   (D, 8H)   bf16   input weights; cols [0:4H] fwd gates (i,f,g,o), [4H:8H] rev
    # wh_ref:   (H, 8H)   bf16   recurrent weights, same column layout
    # b_ref:    (1, 8H)   f32    pre-summed b_ih + b_hh, same column layout
    # wq_ref:   (1, D)    f32    token_att_query weight, pre-scaled by 1/sqrt(hidden_dim)
    # bias_ref: (T, N)    f32    (1 - mask) * -10000 + b_q / sqrt(hidden_dim)
    # drop_ref: (T, D)    f32    dropout keep-mask, pre-scaled by 1/(1-p)
    # out_ref:  (T, D)    f32
    # gx_ref:   (T, 2N, 8H) f32  scratch: hoisted input projection (+ bias)
    # ef_ref:   (T, N, H) f32    scratch: forward LSTM outputs per time position
    # er_ref:   (T, N, H) f32    scratch: reverse LSTM outputs per time position
    T, N, H = ef_ref.shape
    N2 = 2 * N
    D = 2 * H
    G = wx_ref.shape[1]           # 8 * H
    H4 = 4 * H

    # ---- hoisted input projection: ONE well-shaped MXU call for all steps/dirs ----
    x_all = x_ref[...].reshape(T * N2, D)                                    # bf16
    gx = jnp.dot(x_all, wx_ref[...], preferred_element_type=jnp.float32)
    gx = gx + b_ref[...]                                                     # bias folded once
    gx_ref[...] = gx.reshape(T, N2, G)

    wh = wh_ref[...]                                                         # loaded once
    # rows [0:N] = forward direction (gate cols [0:4H]); rows [N:2N] = reverse ([4H:8H])
    fwd_rows = jax.lax.broadcasted_iota(jnp.int32, (N2, H4), 0) < N          # hoisted

    def step(t, carry):
        h, c = carry
        gh = jnp.dot(h.astype(wh.dtype), wh, preferred_element_type=jnp.float32)  # (2N, 8H)
        g8 = gx_ref[t] + gh                                                  # (2N, 8H)
        # 64-lane-aligned column slices + VPU select (no sublane concat in the loop)
        g = jnp.where(fwd_rows, g8[:, 0:H4], g8[:, H4:G])                    # (2N, 4H)
        i_g = jax.nn.sigmoid(g[:, 0:H])
        f_g = jax.nn.sigmoid(g[:, H:2 * H])
        g_g = jnp.tanh(g[:, 2 * H:3 * H])
        o_g = jax.nn.sigmoid(g[:, 3 * H:4 * H])
        c = f_g * c + i_g * g_g
        h = o_g * jnp.tanh(c)
        ef_ref[t] = h[0:N]               # forward hidden -> output time position t
        er_ref[T - 1 - t] = h[N:N2]      # reverse hidden -> output time position T-1-t
        return h, c

    h0 = jnp.zeros((N2, H), jnp.float32)
    c0 = jnp.zeros((N2, H), jnp.float32)
    jax.lax.fori_loop(0, T, step, (h0, c0), unroll=True)

    # ---- batched attention-pooling epilogue: one vectorized pass, one store ----
    e = jnp.concatenate([ef_ref[...], er_ref[...]], axis=-1)                 # (T, N, D)
    # token_att_query (pre-scaled weight) + folded bias/scale/mask adder
    s = jnp.sum(e * wq_ref[...], axis=-1) + bias_ref[...]                    # (T, N)
    # softmax over the sequence axis
    s = s - jnp.max(s, axis=-1, keepdims=True)
    p = jnp.exp(s)
    a = p * pl.reciprocal(jnp.sum(p, axis=-1, keepdims=True), approx=True)   # (T, N)
    # bmm(embed^T, score): weighted sum over the sequence
    pooled = jnp.sum(e * a[:, :, None], axis=1)                              # (T, D)
    # ELU(alpha=1); exact identity expm1(x) = tanh(x/2) * (exp(x) + 1) (precise near 0)
    pneg = jnp.minimum(pooled, 0.0)
    elu_neg = jnp.tanh(0.5 * pneg) * (jnp.exp(pneg) + 1.0)
    pooled = jnp.where(pooled > 0, pooled, elu_neg)
    # dropout: drop_ref already holds 0 or 1/(1-p); single (T, D) store
    out_ref[...] = pooled * drop_ref[...]


def ernie_fused(x_stack, wq_scaled, mask_bias, drop_scale, params):
    T, N2, D = x_stack.shape
    N = N2 // 2
    H = D // 2
    G = params["w_x"].shape[1]
    vmem = pl.BlockSpec(memory_space=pltpu.MemorySpace.VMEM)
    return pl.pallas_call(
        _ernie_fused_kernel,
        out_shape=jax.ShapeDtypeStruct((T, D), jnp.float32),
        in_specs=[vmem] * 7,
        out_specs=vmem,
        scratch_shapes=[
            pltpu.VMEM((T, N2, G), jnp.float32),   # hoisted input projection
            pltpu.VMEM((T, N, H), jnp.float32),    # forward LSTM outputs
            pltpu.VMEM((T, N, H), jnp.float32),    # reverse LSTM outputs
        ],
        compiler_params=pltpu.CompilerParams(vmem_limit_bytes=32 * 1024 * 1024),
    )(x_stack, params["w_x"], params["w_h"], params["b_lstm"],
      wq_scaled, mask_bias, drop_scale)


# =============================================================================
# Parameter init (deterministic, synthetic) and the full forward
# =============================================================================
def init_params(key):
    D, H = BERT_DIM, LSTM_H
    ks = jax.random.split(key, 11)

    def u(k, shape, scale):
        return jax.random.uniform(k, shape, jnp.float32, -scale, scale)

    s = 1.0 / math.sqrt(H)
    # raw nn.LSTM(bert_dim, bert_dim//2, bidirectional=True) parameters
    w_ih_f = u(ks[1], (4 * H, D), s); w_hh_f = u(ks[2], (4 * H, H), s)
    b_ih_f = u(ks[3], (4 * H,), s);   b_hh_f = u(ks[4], (4 * H,), s)
    w_ih_r = u(ks[5], (4 * H, D), s); w_hh_r = u(ks[6], (4 * H, H), s)
    b_ih_r = u(ks[7], (4 * H,), s);   b_hh_r = u(ks[8], (4 * H,), s)

    # pre-transposed / fused layout consumed by the kernel (done once, not per call):
    #   cols [0:4H] forward gates (i,f,g,o), cols [4H:8H] reverse gates.
    # MXU operands kept in bf16 (f32 accumulation inside the kernel).
    w_x = jnp.concatenate([w_ih_f.T, w_ih_r.T], axis=1).astype(jnp.bfloat16)   # (D, 8H)
    w_h = jnp.concatenate([w_hh_f.T, w_hh_r.T], axis=1).astype(jnp.bfloat16)   # (H, 8H)
    b_lstm = jnp.concatenate([b_ih_f + b_hh_f, b_ih_r + b_hh_r])[None, :]      # (1, 8H) f32

    return {
        "emb_table": jax.random.normal(ks[0], (VOCAB, D), jnp.float32) * 0.02,
        "w_x": w_x,
        "w_h": w_h,
        "b_lstm": b_lstm,
        # token_att_query: nn.Linear(bert_dim, 1)
        "w_q": u(ks[9], (1, D), 1.0 / math.sqrt(D)),
        "b_q": jnp.zeros((1,), jnp.float32),
    }


def ernie_module_2_forward(params, input_ids, attention_mask, dropout_key):
    # TODO(synk): pretrained BERT encoder replaced by a deterministic embedding lookup.
    embed = params["emb_table"][input_ids]                     # (B, S, D) last_hidden_state
    B, S, D = embed.shape
    inv_sqrt_hidden = 1.0 / math.sqrt(float(HIDDEN_DIM))

    # The reference feeds a batch-first tensor to a seq-first nn.LSTM, so the recurrence
    # runs over B (= T) with S (= N) as the LSTM "batch".  Stack forward-order and
    # reverse-order inputs once here (rows [0:S] fwd, [S:2S] rev) so the kernel's input
    # projection is one big matmul; cast MXU operands to bf16.
    x_stack = jnp.concatenate([embed, embed[::-1]], axis=1).astype(jnp.bfloat16)  # (B, 2S, D)

    # Fold the query bias and the 1/sqrt(hidden_dim) scale into the weight / additive mask.
    wq_scaled = params["w_q"] * inv_sqrt_hidden                                   # (1, D)
    mask_bias = ((1.0 - attention_mask.astype(jnp.float32)) * (-10000.0)
                 + params["b_q"][0] * inv_sqrt_hidden)                            # (B, S)

    # F.dropout(p=0.4), training=True (functional default): keep-mask generated with
    # jax.random (device-portable), pre-scaled by 1/(1-p) and applied inside the kernel.
    keep = jax.random.bernoulli(dropout_key, 1.0 - DROPOUT_P, (B, D))
    drop_scale = keep.astype(jnp.float32) * (1.0 / (1.0 - DROPOUT_P))

    return ernie_fused(x_stack, wq_scaled, mask_bias, drop_scale, params)  # (B, D)


if __name__ == "__main__":
    key = jax.random.PRNGKey(0)
    kp, ki, kd = jax.random.split(key, 3)
    params = init_params(kp)

    input_ids = jax.random.randint(ki, (BATCH, MAX_SEQ_LEN), 0, VOCAB, dtype=jnp.int32)
    attention_mask = jnp.array([[1, 1, 1, 1, 1, 1, 0, 0],
                                [1, 1, 1, 1, 1, 1, 1, 1]], dtype=jnp.int32)

    out = jax.jit(ernie_module_2_forward)(params, input_ids, attention_mask, kd)
    out = jax.block_until_ready(out)
    assert out.shape == (BATCH, BERT_DIM) and out.dtype == jnp.float32
    assert bool(jnp.all(jnp.isfinite(out)))
    print("KERNEL_OK")
</pallas_src>

<mosaic_0001>
module attributes {stable_mosaic.version = 11 : i64} {
  func.func @_ernie_fused_kernel(%arg0: memref<2x16x32xbf16, #tpu.memory_space<vmem>>, %arg1: memref<32x128xbf16, #tpu.memory_space<vmem>>, %arg2: memref<16x128xbf16, #tpu.memory_space<vmem>>, %arg3: memref<1x128xf32, #tpu.memory_space<vmem>>, %arg4: memref<1x32xf32, #tpu.memory_space<vmem>>, %arg5: memref<2x8xf32, #tpu.memory_space<vmem>>, %arg6: memref<2x32xf32, #tpu.memory_space<vmem>>, %arg7: memref<2x32xf32, #tpu.memory_space<vmem>>, %arg8: memref<2x16x128xf32, #tpu.memory_space<vmem>>, %arg9: memref<2x8x16xf32, #tpu.memory_space<vmem>>, %arg10: memref<2x8x16xf32, #tpu.memory_space<vmem>>) attributes {dimension_semantics = [], scalar_prefetch = 0 : i64, scratch_operands = 3 : i64, tpu.core_type = #tpu.core_type<tc>} {
    %c0 = arith.constant 0 : index
    %c0_0 = arith.constant 0 : index
    %c0_1 = arith.constant 0 : index
    %0 = vector.load %arg0[%c0, %c0_0, %c0_1] : memref<2x16x32xbf16, #tpu.memory_space<vmem>>, vector<2x16x32xbf16>
    %1 = vector.shape_cast %0 : vector<2x16x32xbf16> to vector<32x32xbf16>
    %c0_2 = arith.constant 0 : index
    %c0_3 = arith.constant 0 : index
    %2 = vector.load %arg1[%c0_2, %c0_3] : memref<32x128xbf16, #tpu.memory_space<vmem>>, vector<32x128xbf16>
    %cst = arith.constant dense<0.000000e+00> : vector<32x128xf32>
    %3 = tpu.matmul %1, %2, %cst {dimension_numbers = #tpu.dot_dimension_numbers<[1], [0], [0], [1], [0, 0, 1, 1], [], []>} : vector<32x32xbf16>, vector<32x128xbf16>, vector<32x128xf32> -> vector<32x128xf32>
    %c0_4 = arith.constant 0 : index
    %c0_5 = arith.constant 0 : index
    %4 = vector.load %arg3[%c0_4, %c0_5] : memref<1x128xf32, #tpu.memory_space<vmem>>, vector<1x128xf32>
    %5 = vector.broadcast %4 : vector<1x128xf32> to vector<32x128xf32>
    %6 = arith.addf %3, %5 : vector<32x128xf32>
    %7 = vector.shape_cast %6 : vector<32x128xf32> to vector<2x16x128xf32>
    %c0_6 = arith.constant 0 : index
    %c0_7 = arith.constant 0 : index
    %c0_8 = arith.constant 0 : index
    %8 = vector.load %arg8[%c0_6, %c0_7, %c0_8] : memref<2x16x128xf32, #tpu.memory_space<vmem>>, vector<2x16x128xf32>
    tpu.vector_store %arg8[%c0_6, %c0_7, %c0_8], %7 {strides = array<i32>} : memref<2x16x128xf32, #tpu.memory_space<vmem>>, vector<2x16x128xf32>,
    %c0_9 = arith.constant 0 : index
    %c0_10 = arith.constant 0 : index
    %9 = vector.load %arg2[%c0_9, %c0_10] : memref<16x128xbf16, #tpu.memory_space<vmem>>, vector<16x128xbf16>
    %10 = tpu.iota {dimensions = array<i32: 0>} : vector<16x64xi32>
    %c8_i32 = arith.constant 8 : i32
    %11 = vector.broadcast %c8_i32 : i32 to vector<16x64xi32>
    %12 = arith.cmpi slt, %10, %11 : vector<16x64xi32>
    %cst_11 = arith.constant 0.000000e+00 : f32
    %13 = vector.broadcast %cst_11 : f32 to vector<16x16xf32>
    %cst_12 = arith.constant 0.000000e+00 : f32
    %14 = vector.broadcast %cst_12 : f32 to vector<16x16xf32>
    %c0_i32 = arith.constant 0 : i32
    %15 = arith.truncf %13 : vector<16x16xf32> to vector<16x16xbf16>
    %cst_13 = arith.constant dense<0.000000e+00> : vector<16x128xf32>
    %16 = tpu.matmul %15, %9, %cst_13 {dimension_numbers = #tpu.dot_dimension_numbers<[1], [0], [0], [1], [0, 0, 1, 1], [], []>} : vector<16x16xbf16>, vector<16x128xbf16>, vector<16x128xf32> -> vector<16x128xf32>
    %17 = arith.index_cast %c0_i32 : i32 to index
    %c0_14 = arith.constant 0 : index
    %c0_15 = arith.constant 0 : index
    %18 = vector.load %arg8[%17, %c0_14, %c0_15] : memref<2x16x128xf32, #tpu.memory_space<vmem>>, vector<1x16x128xf32>
    %19 = vector.shape_cast %18 : vector<1x16x128xf32> to vector<16x128xf32>
    %20 = arith.addf %19, %16 : vector<16x128xf32>
    %21 = vector.extract_strided_slice %20 {offsets = [0, 0], sizes = [16, 64], strides = [1, 1]} : vector<16x128xf32> to vector<16x64xf32>
    %22 = vector.extract_strided_slice %20 {offsets = [0, 64], sizes = [16, 64], strides = [1, 1]} : vector<16x128xf32> to vector<16x64xf32>
    %23 = arith.select %12, %21, %22 : vector<16x64xi1>, vector<16x64xf32>
    %24 = vector.extract_strided_slice %23 {offsets = [0, 0], sizes = [16, 16], strides = [1, 1]} : vector<16x64xf32> to vector<16x16xf32>
    %25 = arith.negf %24 : vector<16x16xf32>
    %26 = math.exp %25 : vector<16x16xf32>
    %cst_16 = arith.constant 1.000000e+00 : f32
    %27 = vector.broadcast %cst_16 : f32 to vector<16x16xf32>
    %28 = arith.addf %27, %26 : vector<16x16xf32>
    %29 = arith.divf %27, %28 : vector<16x16xf32>
    %30 = vector.extract_strided_slice %23 {offsets = [0, 16], sizes = [16, 16], strides = [1, 1]} : vector<16x64xf32> to vector<16x16xf32>
    %31 = arith.negf %30 : vector<16x16xf32>
    %32 = math.exp %31 : vector<16x16xf32>
    %cst_17 = arith.constant 1.000000e+00 : f32
    %33 = vector.broadcast %cst_17 : f32 to vector<16x16xf32>
    %34 = arith.addf %33, %32 : vector<16x16xf32>
    %35 = arith.divf %33, %34 : vector<16x16xf32>
    %36 = vector.extract_strided_slice %23 {offsets = [0, 32], sizes = [16, 16], strides = [1, 1]} : vector<16x64xf32> to vector<16x16xf32>
    %37 = math.tanh %36 : vector<16x16xf32>
    %38 = vector.extract_strided_slice %23 {offsets = [0, 48], sizes = [16, 16], strides = [1, 1]} : vector<16x64xf32> to vector<16x16xf32>
    %39 = arith.negf %38 : vector<16x16xf32>
    %40 = math.exp %39 : vector<16x16xf32>
    %cst_18 = arith.constant 1.000000e+00 : f32
    %41 = vector.broadcast %cst_18 : f32 to vector<16x16xf32>
    %42 = arith.addf %41, %40 : vector<16x16xf32>
    %43 = arith.divf %41, %42 : vector<16x16xf32>
    %44 = arith.mulf %35, %14 : vector<16x16xf32>
    %45 = arith.mulf %29, %37 : vector<16x16xf32>
    %46 = arith.addf %44, %45 : vector<16x16xf32>
    %47 = math.tanh %46 : vector<16x16xf32>
    %48 = arith.mulf %43, %47 : vector<16x16xf32>
    %49 = vector.extract_strided_slice %48 {offsets = [0, 0], sizes = [8, 16], strides = [1, 1]} : vector<16x16xf32> to vector<8x16xf32>
    %50 = arith.index_cast %c0_i32 : i32 to index
    %c0_19 = arith.constant 0 : index
    %c0_20 = arith.constant 0 : index
    %51 = vector.load %arg9[%50, %c0_19, %c0_20] : memref<2x8x16xf32, #tpu.memory_space<vmem>>, vector<1x8x16xf32>
    %52 = vector.shape_cast %51 : vector<1x8x16xf32> to vector<8x16xf32>
    %53 = vector.shape_cast %49 : vector<8x16xf32> to vector<1x8x16xf32>
    tpu.vector_store %arg9[%50, %c0_19, %c0_20], %53 {strides = array<i32>} : memref<2x8x16xf32, #tpu.memory_space<vmem>>, vector<1x8x16xf32>,
    %54 = vector.extract_strided_slice %48 {offsets = [8, 0], sizes = [8, 16], strides = [1, 1]} : vector<16x16xf32> to vector<8x16xf32>
    %c1_i32 = arith.constant 1 : i32
    %55 = arith.subi %c1_i32, %c0_i32 : i32
    %56 = arith.index_cast %55 : i32 to index
    %c0_21 = arith.constant 0 : index
    %c0_22 = arith.constant 0 : index
    %57 = vector.load %arg10[%56, %c0_21, %c0_22] : memref<2x8x16xf32, #tpu.memory_space<vmem>>, vector<1x8x16xf32>
    %58 = vector.shape_cast %57 : vector<1x8x16xf32> to vector<8x16xf32>
    %59 = vector.shape_cast %54 : vector<8x16xf32> to vector<1x8x16xf32>
    tpu.vector_store %arg10[%56, %c0_21, %c0_22], %59 {strides = array<i32>} : memref<2x8x16xf32, #tpu.memory_space<vmem>>, vector<1x8x16xf32>,
    %c1_i32_23 = arith.constant 1 : i32
    %60 = arith.truncf %48 : vector<16x16xf32> to vector<16x16xbf16>
    %cst_24 = arith.constant dense<0.000000e+00> : vector<16x128xf32>
    %61 = tpu.matmul %60, %9, %cst_24 {dimension_numbers = #tpu.dot_dimension_numbers<[1], [0], [0], [1], [0, 0, 1, 1], [], []>} : vector<16x16xbf16>, vector<16x128xbf16>, vector<16x128xf32> -> vector<16x128xf32>
    %62 = arith.index_cast %c1_i32_23 : i32 to index
    %c0_25 = arith.constant 0 : index
    %c0_26 = arith.constant 0 : index
    %63 = vector.load %arg8[%62, %c0_25, %c0_26] : memref<2x16x128xf32, #tpu.memory_space<vmem>>, vector<1x16x128xf32>
    %64 = vector.shape_cast %63 : vector<1x16x128xf32> to vector<16x128xf32>
    %65 = arith.addf %64, %61 : vector<16x128xf32>
    %66 = vector.extract_strided_slice %65 {offsets = [0, 0], sizes = [16, 64], strides = [1, 1]} : vector<16x128xf32> to vector<16x64xf32>
    %67 = vector.extract_strided_slice %65 {offsets = [0, 64], sizes = [16, 64], strides = [1, 1]} : vector<16x128xf32> to vector<16x64xf32>
    %68 = arith.select %12, %66, %67 : vector<16x64xi1>, vector<16x64xf32>
    %69 = vector.extract_strided_slice %68 {offsets = [0, 0], sizes = [16, 16], strides = [1, 1]} : vector<16x64xf32> to vector<16x16xf32>
    %70 = arith.negf %69 : vector<16x16xf32>
    %71 = math.exp %70 : vector<16x16xf32>
    %cst_27 = arith.constant 1.000000e+00 : f32
    %72 = vector.broadcast %cst_27 : f32 to vector<16x16xf32>
    %73 = arith.addf %72, %71 : vector<16x16xf32>
    %74 = arith.divf %72, %73 : vector<16x16xf32>
    %75 = vector.extract_strided_slice %68 {offsets = [0, 16], sizes = [16, 16], strides = [1, 1]} : vector<16x64xf32> to vector<16x16xf32>
    %76 = arith.negf %75 : vector<16x16xf32>
    %77 = math.exp %76 : vector<16x16xf32>
    %cst_28 = arith.constant 1.000000e+00 : f32
    %78 = vector.broadcast %cst_28 : f32 to vector<16x16xf32>
    %79 = arith.addf %78, %77 : vector<16x16xf32>
    %80 = arith.divf %78, %79 : vector<16x16xf32>
    %81 = vector.extract_strided_slice %68 {offsets = [0, 32], sizes = [16, 16], strides = [1, 1]} : vector<16x64xf32> to vector<16x16xf32>
    %82 = math.tanh %81 : vector<16x16xf32>
    %83 = vector.extract_strided_slice %68 {offsets = [0, 48], sizes = [16, 16], strides = [1, 1]} : vector<16x64xf32> to vector<16x16xf32>
    %84 = arith.negf %83 : vector<16x16xf32>
    %85 = math.exp %84 : vector<16x16xf32>
    %cst_29 = arith.constant 1.000000e+00 : f32
    %86 = vector.broadcast %cst_29 : f32 to vector<16x16xf32>
    %87 = arith.addf %86, %85 : vector<16x16xf32>
    %88 = arith.divf %86, %87 : vector<16x16xf32>
    %89 = arith.mulf %80, %46 : vector<16x16xf32>
    %90 = arith.mulf %74, %82 : vector<16x16xf32>
    %91 = arith.addf %89, %90 : vector<16x16xf32>
    %92 = math.tanh %91 : vector<16x16xf32>
    %93 = arith.mulf %88, %92 : vector<16x16xf32>
    %94 = vector.extract_strided_slice %93 {offsets = [0, 0], sizes = [8, 16], strides = [1, 1]} : vector<16x16xf32> to vector<8x16xf32>
    %95 = arith.index_cast %c1_i32_23 : i32 to index
    %c0_30 = arith.constant 0 : index
    %c0_31 = arith.constant 0 : index
    %96 = vector.load %arg9[%95, %c0_30, %c0_31] : memref<2x8x16xf32, #tpu.memory_space<vmem>>, vector<1x8x16xf32>
    %97 = vector.shape_cast %96 : vector<1x8x16xf32> to vector<8x16xf32>
    %98 = vector.shape_cast %94 : vector<8x16xf32> to vector<1x8x16xf32>
    tpu.vector_store %arg9[%95, %c0_30, %c0_31], %98 {strides = array<i32>} : memref<2x8x16xf32, #tpu.memory_space<vmem>>, vector<1x8x16xf32>,
    %99 = vector.extract_strided_slice %93 {offsets = [8, 0], sizes = [8, 16], strides = [1, 1]} : vector<16x16xf32> to vector<8x16xf32>
    %c1_i32_32 = arith.constant 1 : i32
    %100 = arith.subi %c1_i32_32, %c1_i32_23 : i32
    %101 = arith.index_cast %100 : i32 to index
    %c0_33 = arith.constant 0 : index
    %c0_34 = arith.constant 0 : index
    %102 = vector.load %arg10[%101, %c0_33, %c0_34] : memref<2x8x16xf32, #tpu.memory_space<vmem>>, vector<1x8x16xf32>
    %103 = vector.shape_cast %102 : vector<1x8x16xf32> to vector<8x16xf32>
    %104 = vector.shape_cast %99 : vector<8x16xf32> to vector<1x8x16xf32>
    tpu.vector_store %arg10[%101, %c0_33, %c0_34], %104 {strides = array<i32>} : memref<2x8x16xf32, #tpu.memory_space<vmem>>, vector<1x8x16xf32>,
    %c2_i32 = arith.constant 2 : i32
    %c0_35 = arith.constant 0 : index
    %c0_36 = arith.constant 0 : index
    %c0_37 = arith.constant 0 : index
    %105 = vector.load %arg9[%c0_35, %c0_36, %c0_37] : memref<2x8x16xf32, #tpu.memory_space<vmem>>, vector<2x8x16xf32>
    %c0_38 = arith.constant 0 : index
    %c0_39 = arith.constant 0 : index
    %c0_40 = arith.constant 0 : index
    %106 = vector.load %arg10[%c0_38, %c0_39, %c0_40] : memref<2x8x16xf32, #tpu.memory_space<vmem>>, vector<2x8x16xf32>
    %107 = tpu.concatenate %105, %106 in 2 : vector<2x8x16xf32>, vector<2x8x16xf32> -> vector<2x8x32xf32>
    %c0_41 = arith.constant 0 : index
    %c0_42 = arith.constant 0 : index
    %108 = vector.load %arg4[%c0_41, %c0_42] : memref<1x32xf32, #tpu.memory_space<vmem>>, vector<1x32xf32>
    %109 = vector.shape_cast %108 : vector<1x32xf32> to vector<1x1x32xf32>
    %110 = vector.broadcast %109 : vector<1x1x32xf32> to vector<2x8x32xf32>
    %111 = arith.mulf %107, %110 : vector<2x8x32xf32>
    %cst_43 = arith.constant dense<0.000000e+00> : vector<2x8xf32>
    %112 = vector.multi_reduction <add>, %111, %cst_43 [2] : vector<2x8x32xf32> to vector<2x8xf32>
    %c0_44 = arith.constant 0 : index
    %c0_45 = arith.constant 0 : index
    %113 = vector.load %arg5[%c0_44, %c0_45] : memref<2x8xf32, #tpu.memory_space<vmem>>, vector<2x8xf32>
    %114 = arith.addf %112, %113 : vector<2x8xf32>
    %cst_46 = arith.constant dense<0xFF800000> : vector<2xf32>
    %115 = vector.multi_reduction <maximumf>, %114, %cst_46 [1] : vector<2x8xf32> to vector<2xf32>
    %116 = vector.shape_cast %115 : vector<2xf32> to vector<2x1xf32>
    %117 = vector.broadcast %116 : vector<2x1xf32> to vector<2x8xf32>
    %118 = arith.subf %114, %117 : vector<2x8xf32>
    %119 = math.exp %118 : vector<2x8xf32>
    %cst_47 = arith.constant dense<0.000000e+00> : vector<2xf32>
    %120 = vector.multi_reduction <add>, %119, %cst_47 [1] : vector<2x8xf32> to vector<2xf32>
    %121 = vector.shape_cast %120 : vector<2xf32> to vector<2x1xf32>
    %122 = tpu.reciprocal %121 {approx = true} : vector<2x1xf32> -> vector<2x1xf32>
    %123 = vector.broadcast %122 : vector<2x1xf32> to vector<2x8xf32>
    %124 = arith.mulf %119, %123 : vector<2x8xf32>
    %125 = vector.shape_cast %124 : vector<2x8xf32> to vector<2x8x1xf32>
    %126 = vector.broadcast %125 : vector<2x8x1xf32> to vector<2x8x32xf32>
    %127 = arith.mulf %107, %126 : vector<2x8x32xf32>
    %cst_48 = arith.constant dense<0.000000e+00> : vector<2x32xf32>
    %128 = vector.multi_reduction <add>, %127, %cst_48 [1] : vector<2x8x32xf32> to vector<2x32xf32>
    %cst_49 = arith.constant 0.000000e+00 : f32
    %129 = vector.broadcast %cst_49 : f32 to vector<2x32xf32>
    %130 = arith.minimumf %128, %129 : vector<2x32xf32>
    %cst_50 = arith.constant 5.000000e-01 : f32
    %131 = vector.broadcast %cst_50 : f32 to vector<2x32xf32>
    %132 = arith.mulf %131, %130 : vector<2x32xf32>
    %133 = math.tanh %132 : vector<2x32xf32>
    %134 = math.exp %130 : vector<2x32xf32>
    %cst_51 = arith.constant 1.000000e+00 : f32
    %135 = vector.broadcast %cst_51 : f32 to vector<2x32xf32>
    %136 = arith.addf %134, %135 : vector<2x32xf32>
    %137 = arith.mulf %133, %136 : vector<2x32xf32>
    %cst_52 = arith.constant 0.000000e+00 : f32
    %138 = vector.broadcast %cst_52 : f32 to vector<2x32xf32>
    %139 = arith.cmpf ogt, %128, %138 : vector<2x32xf32>
    %140 = arith.select %139, %128, %137 : vector<2x32xi1>, vector<2x32xf32>
    %c0_53 = arith.constant 0 : index
    %c0_54 = arith.constant 0 : index
    %141 = vector.load %arg6[%c0_53, %c0_54] : memref<2x32xf32, #tpu.memory_space<vmem>>, vector<2x32xf32>
    %142 = arith.mulf %140, %141 : vector<2x32xf32>
    %c0_55 = arith.constant 0 : index
    %c0_56 = arith.constant 0 : index
    %143 = vector.load %arg7[%c0_55, %c0_56] : memref<2x32xf32, #tpu.memory_space<vmem>>, vector<2x32xf32>
    tpu.vector_store %arg7[%c0_55, %c0_56], %142 {strides = array<i32>} : memref<2x32xf32, #tpu.memory_space<vmem>>, vector<2x32xf32>,
    return
  }
}

</mosaic_0001>

<llo_original>
// kernel: ernie_module_2_forward.1
$region0: #{ernie_module_2_forward.1}
  #allocation0 [shape = 'u32[]', space=smem, size = 0x4, offset = 0x4, fixed_abs, tag = 'smem constant byte address 0x4 - core index']
  #allocation1 [shape = 'u32[144,128]{1,0:T(1,128)}', space=vmem, size = 0x12000, scoped, tag = 'internal scratch']
  #allocation2 [shape = 'f32[2,16,128]{2,1,0:T(8,128)}', space=vmem, size = 0x4000, scoped, tag = 'scratch operand']
  #allocation3 [shape = 'f32[2,8,16]{2,1,0:T(8,128)}', space=vmem, size = 0x2000, scoped, tag = 'scratch operand']
  #allocation4 [shape = 'f32[2,8,16]{2,1,0:T(8,128)}', space=vmem, size = 0x2000, scoped, tag = 'scratch operand']
  %s0 = inlined_call_operand.vmem [shape: bf16[2,16,32], index: 0, kind: input, shape index: {}]
  %s1 = inlined_call_operand.vmem [shape: bf16[32,128], index: 1, kind: input, shape index: {}]
  %s2 = inlined_call_operand.vmem [shape: bf16[16,128], index: 2, kind: input, shape index: {}]
  %s3 = inlined_call_operand.vmem [shape: f32[1,128], index: 3, kind: input, shape index: {}]
  %s4 = inlined_call_operand.vmem [shape: f32[1,32], index: 4, kind: input, shape index: {}]
  %s5 = inlined_call_operand.vmem [shape: f32[2,8], index: 5, kind: input, shape index: {}]
  %s6 = inlined_call_operand.vmem [shape: f32[2,32], index: 6, kind: input, shape index: {}]
  %s7 = inlined_call_operand.hbm [shape: f32[2,32], index: 7, kind: output, shape index: {}]
  %s8 = sld [smem:[#allocation0]]
  $region38: #{ernie_module_2_forward.1} parent=0
    _
  %s10 = ssub.s32 1, %s8
  %s11 = scalar_select 0, %s10, %s8
  $region1: #{ernie_module_2_forward.1} parent=0
    #allocation5 [shape = 'u8[1024]{0}', space=vmem, size = 0x400, scoped, tag = 'output window, operand 0, single buffered']
    #allocation6 [shape = 's32[1]{0}', space=sflag, size = 0x4, scoped, tag = 'scoped memory for ernie_module_2_forward.1']
    %12 = vsyncpa [#allocation6], 0
    // Predicated region
    $region2: #{ernie_module_2_forward.1} parent=1 // pred_check
      _
    $region3: #{ernie_module_2_forward.1} parent=1 // pred_check_branch
      %14 = sbr.rel (0) target = $region5
    $region4: #{ernie_module_2_forward.1} parent=1 // pred_region
      _
    $region5: #{ernie_module_2_forward.1} parent=1 // pred_fallthru
      _
    // Predicated region
    $region6: #{ernie_module_2_forward.1} parent=1 // pred_check
      _
    $region7: #{ernie_module_2_forward.1} parent=1 // pred_check_branch
      %16 = sbr.rel (0) target = $region9
    $region8: #{ernie_module_2_forward.1} parent=1 // pred_region
      _
    $region9: #{ernie_module_2_forward.1} parent=1 // pred_fallthru
      _
    // Predicated region
    $region10: #{ernie_module_2_forward.1} parent=1 // pred_check
      _
    $region11: #{ernie_module_2_forward.1} parent=1 // pred_check_branch
      %18 = sbr.rel (0) target = $region13
    $region12: #{ernie_module_2_forward.1} parent=1 // pred_region
      _
    $region13: #{ernie_module_2_forward.1} parent=1 // pred_fallthru
      _
    // Predicated region
    $region14: #{ernie_module_2_forward.1} parent=1 // pred_check
      _
    $region15: #{ernie_module_2_forward.1} parent=1 // pred_check_branch
      %20 = sbr.rel (0) target = $region17
    $region16: #{ernie_module_2_forward.1} parent=1 // pred_region
      _
    $region17: #{ernie_module_2_forward.1} parent=1 // pred_fallthru
      _
    // Predicated region
    $region18: #{ernie_module_2_forward.1} parent=1 // pred_check
      _
    $region19: #{ernie_module_2_forward.1} parent=1 // pred_check_branch
      %22 = sbr.rel (0) target = $region21
    $region20: #{ernie_module_2_forward.1} parent=1 // pred_region
      _
    $region21: #{ernie_module_2_forward.1} parent=1 // pred_fallthru
      _
    // Predicated region
    $region22: #{ernie_module_2_forward.1} parent=1 // pred_check
      _
    $region23: #{ernie_module_2_forward.1} parent=1 // pred_check_branch
      %24 = sbr.rel (0) target = $region25
    $region24: #{ernie_module_2_forward.1} parent=1 // pred_region
      _
    $region25: #{ernie_module_2_forward.1} parent=1 // pred_fallthru
      _
    // Predicated region
    $region26: #{ernie_module_2_forward.1} parent=1 // pred_check
      _
    $region27: #{ernie_module_2_forward.1} parent=1 // pred_check_branch
      %26 = sbr.rel (0) target = $region29
    $region28: #{ernie_module_2_forward.1} parent=1 // pred_region
      _
    $region29: #{ernie_module_2_forward.1} parent=1 // pred_fallthru
      _
    %v28 = vld [vmem:[%s0] sm:$0xf]
    %v29 = vld [vmem:[%s0 + $0x4] sm:$0xf]
    %v30 = vld [vmem:[%s0 + $0x8] sm:$0xf]
    %v31 = vld [vmem:[%s0 + $0xc] sm:$0xf]
    %v32 = vld [vmem:[%s1] sm:$0xf]
    %v33 = vld [vmem:[%s1 + $0x4] sm:$0xf]
    %v34 = vld [vmem:[%s1 + $0x8] sm:$0xf]
    %v35 = vld [vmem:[%s1 + $0xc] sm:$0xf]
    %v36 = vld [vmem:[%s3] sm:$0x1]
    %v38 = vlaneseq
    %v39 = vshrl.u32 %v38, 7
    %v40 = vsub.s32 0, %v39
    %v41 = vrot.slane %v36, %v40
    %v47 = vunpack.c.l.b16 %v28
    %v48 = vunpack.c.l.b16 %v29
    %v49 = vunpack.c.l.b16 %v30
    %v50 = vunpack.c.l.b16 %v31
    %v51 = vpack.c.b16 %v48, %v47
    %v52 = vpack.c.b16 %v50, %v49
    %v57 = vunpack.c.l.b16 %v32
    %v58 = vunpack.c.l.b16 %v33
    %v59 = vunpack.c.l.b16 %v34
    %v60 = vunpack.c.l.b16 %v35
    %v61 = vpack.c.b16 %v58, %v57
    %v62 = vpack.c.b16 %v60, %v59
    %vm65 = vcmask 261120
    %v67 = vsel %vm65, %v51, 0
    %v70 = vsel %vm65, %v52, 0
    %72 = vmatprep.subr.bf16.mxu0 0
    %73 = vmatpush1.bf16.msra.mxu0 %v61
    %74 = vmatprep.subr.bf16.mxu0 0
    %75 = vmatpush1.bf16.msra.mxu0 %v62
    %76 = vmatprep.subr.bf16.mxu0 0
    %77 = vmatpush1.bf16.msra.mxu0 0
    %78 = vmatprep.subr.bf16.mxu0 0
    %79 = vmatpush1.bf16.msra.mxu0 0
    %80 = vmatprep.subr.bf16.mxu0 0
    %81 = vmatpush1.bf16.msra.mxu0 0
    %82 = vmatprep.subr.bf16.mxu0 0
    %83 = vmatpush1.bf16.msra.mxu0 0
    %84 = vmatprep.subr.bf16.mxu0 0
    %85 = vmatpush1.bf16.msra.mxu0 0
    %86 = vmatprep.subr.bf16.mxu0 0
    %87 = vmatpush1.bf16.msra.mxu0 0
    %88 = vmatprep.subr.bf16.mxu0 0
    %89 = vmatpush1.bf16.msra.mxu0 0
    %90 = vmatprep.subr.bf16.mxu0 0
    %91 = vmatpush1.bf16.msra.mxu0 0
    %92 = vmatprep.subr.bf16.mxu0 0
    %93 = vmatpush1.bf16.msra.mxu0 0
    %94 = vmatprep.subr.bf16.mxu0 0
    %95 = vmatpush1.bf16.msra.mxu0 0
    %96 = vmatprep.subr.bf16.mxu0 0
    %97 = vmatpush1.bf16.msra.mxu0 0
    %98 = vmatprep.subr.bf16.mxu0 0
    %99 = vmatpush1.bf16.msra.mxu0 0
    %100 = vmatprep.subr.bf16.mxu0 0
    %101 = vmatpush1.bf16.msra.mxu0 0
    %102 = vmatprep.subr.bf16.mxu0 0
    %103 = vmatpush1.bf16.msra.mxu0 0
    %104 = vmatprep.mubr.bf16.mxu0 0
    %105 = vmatmul.mubr.bf16.gmra.mrb[0].mxu0 %v67
    %v106 = vpop.f32.mrb[0].mxu0
    %v107 = vadd.f32 %v41, %v106
    %v108 = vpop.f32.mrb[0].mxu0
    %v109 = vpop.f32.mrb[0].mxu0
    %v110 = vadd.f32 %v41, %v109
    %v111 = vpop.f32.mrb[0].mxu0
    %112 = vmatprep.mubr.bf16.mxu0 0
    %113 = vmatmul.mubr.bf16.gmra.mrb[0].mxu0 %v70
    %v114 = vpop.f32.mrb[0].mxu0
    %v115 = vadd.f32 %v41, %v114
    %v116 = vpop.f32.mrb[0].mxu0
    %v117 = vpop.f32.mrb[0].mxu0
    %v118 = vadd.f32 %v41, %v117
    %v119 = vpop.f32.mrb[0].mxu0
    %120 = vdwg.mxu0
    %121 = vst [vmem:[#allocation2] sm:$0xff] %v107
    %122 = vst [vmem:[#allocation2 + $0x8] sm:$0xff] %v110
    %123 = vst [vmem:[#allocation2 + $0x10] sm:$0xff] %v115
    %124 = vst [vmem:[#allocation2 + $0x18] sm:$0xff] %v118
    %v125 = vld [vmem:[%s2] sm:$0xf]
    %v126 = vld [vmem:[%s2 + $0x4] sm:$0xf]
    %v127 = vlaneseq
    %v128 = vshrl.u32 %v127, 7
    %v129 = vadd.s32 %v128, 8
    %vm130 = vcmp.lt.s32.totalorder %v128, 8
    %vm131 = vcmp.lt.s32.totalorder %v129, 8
    %v134 = vunpack.c.l.b16 %v125
    %v135 = vunpack.c.l.b16 %v126
    %v136 = vpack.c.b16 %v135, %v134
    %vm138 = vcmask 130048
    %v140 = vsel %vm138, 0, 0
    %142 = vmatprep.subr.bf16.mxu0 0
    %143 = vmatpush1.bf16.msra.mxu0 %v136
    %144 = vmatprep.subr.bf16.mxu0 0
    %145 = vmatpush1.bf16.msra.mxu0 0
    %146 = vmatprep.subr.bf16.mxu0 0
    %147 = vmatpush1.bf16.msra.mxu0 0
    %148 = vmatprep.subr.bf16.mxu0 0
    %149 = vmatpush1.bf16.msra.mxu0 0
    %150 = vmatprep.subr.bf16.mxu0 0
    %151 = vmatpush1.bf16.msra.mxu0 0
    %152 = vmatprep.subr.bf16.mxu0 0
    %153 = vmatpush1.bf16.msra.mxu0 0
    %154 = vmatprep.subr.bf16.mxu0 0
    %155 = vmatpush1.bf16.msra.mxu0 0
    %156 = vmatprep.subr.bf16.mxu0 0
    %157 = vmatpush1.bf16.msra.mxu0 0
    %158 = vmatprep.subr.bf16.mxu0 0
    %159 = vmatpush1.bf16.msra.mxu0 0
    %160 = vmatprep.subr.bf16.mxu0 0
    %161 = vmatpush1.bf16.msra.mxu0 0
    %162 = vmatprep.subr.bf16.mxu0 0
    %163 = vmatpush1.bf16.msra.mxu0 0
    %164 = vmatprep.subr.bf16.mxu0 0
    %165 = vmatpush1.bf16.msra.mxu0 0
    %166 = vmatprep.subr.bf16.mxu0 0
    %167 = vmatpush1.bf16.msra.mxu0 0
    %168 = vmatprep.subr.bf16.mxu0 0
    %169 = vmatpush1.bf16.msra.mxu0 0
    %170 = vmatprep.subr.bf16.mxu0 0
    %171 = vmatpush1.bf16.msra.mxu0 0
    %172 = vmatprep.subr.bf16.mxu0 0
    %173 = vmatpush1.bf16.msra.mxu0 0
    %174 = vmatprep.mubr.bf16.mxu0 0
    %175 = vmatmul.mubr.bf16.gmra.mrb[0].mxu0 %v140
    %v176 = vpop.f32.mrb[0].mxu0
    %v177 = vadd.f32 0.0, %v176
    %v178 = vpop.f32.mrb[0].mxu0
    %v179 = vpop.f32.mrb[0].mxu0
    %v180 = vadd.f32 0.0, %v179
    %v181 = vpop.f32.mrb[0].mxu0
    %182 = vdwg.mxu0
    %v183 = vld [vmem:[#allocation2] sm:$0xff]
    %v184 = vld [vmem:[#allocation2 + $0x8] sm:$0xff]
    %v185 = vadd.f32 %v183, %v177
    %v186 = vadd.f32 %v184, %v180
    %189 = vrot.lane.b32.xlu0 %v185, 64
    %v190 = vpop.permute.xlu0 %189
    %191 = vrot.lane.b32.xlu0 %v186, 64
    %v192 = vpop.permute.xlu0 %191
    %v195 = vsel %vm130, %v185, %v190
    %v196 = vsel %vm131, %v186, %v192
    %v197 = vxor.u32 %v195, 2147483648
    %v198 = vxor.u32 %v196, 2147483648
    %v199 = vmul.f32 %v197, 1.442695
    %v200 = vpow.pop %v199
    %v201 = vmul.f32 %v198, 1.442695
    %v202 = vpow.pop %v201
    %v203 = vadd.f32 %v200, 1.0
    %v204 = vadd.f32 %v202, 1.0
    %v205 = vrcp.pop %v203
    %v206 = vmul.f32 1.0, %v205
    %v207 = vrcp.pop %v204
    %v208 = vmul.f32 1.0, %v207
    %v209 = vtanh.pop %v195
    %v210 = vtanh.pop %v196
    %v211 = vmul.f32 %v206, 0.0
    %v212 = vmul.f32 %v208, 0.0
    %215 = vrot.lane.b32.xlu0 %v209, 96
    %v216 = vpop.permute.xlu0 %215
    %217 = vrot.lane.b32.xlu0 %v210, 96
    %v218 = vpop.permute.xlu0 %217
    %v221 = vmul.f32 %v206, %v216
    %v222 = vmul.f32 %v208, %v218
    %225 = vrot.lane.b32.xlu0 %v221, 16
    %v226 = vpop.permute.xlu0 %225
    %227 = vrot.lane.b32.xlu0 %v222, 16
    %v228 = vpop.permute.xlu0 %227
    %v231 = vadd.f32 %v211, %v226
    %v232 = vadd.f32 %v212, %v228
    %v233 = vtanh.pop %v231
    %v234 = vtanh.pop %v232
    %237 = vrot.lane.b32.xlu0 %v233, 32
    %v238 = vpop.permute.xlu0 %237
    %239 = vrot.lane.b32.xlu0 %v234, 32
    %v240 = vpop.permute.xlu0 %239
    %v243 = vmul.f32 %v206, %v238
    %v244 = vmul.f32 %v208, %v240
    %246 = vrot.lane.b32.xlu0 %v243, 80
    %v247 = vpop.permute.xlu0 %246
    %249 = vst.msk [vmem:[#allocation3] sm:$0xff] %vm138, %v247
    %251 = vrot.lane.b32.xlu0 %v244, 80
    %v252 = vpop.permute.xlu0 %251
    %s254 = scalar_lea.vmem [#allocation4], 8
    %255 = vst.msk [vmem:[%s254] sm:$0xff] %vm138, %v252
    %v256 = vpack.c.bf16 %v244, %v243
    %258 = vrot.lane.b32.xlu0 %v256, 80
    %v259 = vpop.permute.xlu0 %258
    %v261 = vsel %vm138, %v259, 0
    %263 = vmatprep.subr.bf16.mxu0 0
    %264 = vmatpush1.bf16.msra.mxu0 %v136
    %265 = vmatprep.subr.bf16.mxu0 0
    %266 = vmatpush1.bf16.msra.mxu0 0
    %267 = vmatprep.subr.bf16.mxu0 0
    %268 = vmatpush1.bf16.msra.mxu0 0
    %269 = vmatprep.subr.bf16.mxu0 0
    %270 = vmatpush1.bf16.msra.mxu0 0
    %271 = vmatprep.subr.bf16.mxu0 0
    %272 = vmatpush1.bf16.msra.mxu0 0
    %273 = vmatprep.subr.bf16.mxu0 0
    %274 = vmatpush1.bf16.msra.mxu0 0
    %275 = vmatprep.subr.bf16.mxu0 0
    %276 = vmatpush1.bf16.msra.mxu0 0
    %277 = vmatprep.subr.bf16.mxu0 0
    %278 = vmatpush1.bf16.msra.mxu0 0
    %279 = vmatprep.subr.bf16.mxu0 0
    %280 = vmatpush1.bf16.msra.mxu0 0
    %281 = vmatprep.subr.bf16.mxu0 0
    %282 = vmatpush1.bf16.msra.mxu0 0
    %283 = vmatprep.subr.bf16.mxu0 0
    %284 = vmatpush1.bf16.msra.mxu0 0
    %285 = vmatprep.subr.bf16.mxu0 0
    %286 = vmatpush1.bf16.msra.mxu0 0
    %287 = vmatprep.subr.bf16.mxu0 0
    %288 = vmatpush1.bf16.msra.mxu0 0
    %289 = vmatprep.subr.bf16.mxu0 0
    %290 = vmatpush1.bf16.msra.mxu0 0
    %291 = vmatprep.subr.bf16.mxu0 0
    %292 = vmatpush1.bf16.msra.mxu0 0
    %293 = vmatprep.subr.bf16.mxu0 0
    %294 = vmatpush1.bf16.msra.mxu0 0
    %295 = vmatprep.mubr.bf16.mxu0 0
    %296 = vmatmul.mubr.bf16.gmra.mrb[0].mxu0 %v261
    %v297 = vpop.f32.mrb[0].mxu0
    %v298 = vadd.f32 0.0, %v297
    %v299 = vpop.f32.mrb[0].mxu0
    %v300 = vpop.f32.mrb[0].mxu0
    %v301 = vadd.f32 0.0, %v300
    %v302 = vpop.f32.mrb[0].mxu0
    %303 = vdwg.mxu0
    %s304 = scalar_lea.vmem [#allocation2], 16
    %v305 = vld [vmem:[%s304] sm:$0xff]
    %v306 = vld [vmem:[%s304 + $0x8] sm:$0xff]
    %v307 = vadd.f32 %v305, %v298
    %v308 = vadd.f32 %v306, %v301
    %311 = vrot.lane.b32.xlu0 %v307, 64
    %v312 = vpop.permute.xlu0 %311
    %313 = vrot.lane.b32.xlu0 %v308, 64
    %v314 = vpop.permute.xlu0 %313
    %v317 = vsel %vm130, %v307, %v312
    %v318 = vsel %vm131, %v308, %v314
    %v319 = vxor.u32 %v317, 2147483648
    %v320 = vxor.u32 %v318, 2147483648
    %v321 = vmul.f32 %v319, 1.442695
    %v322 = vpow.pop %v321
    %v323 = vmul.f32 %v320, 1.442695
    %v324 = vpow.pop %v323
    %v325 = vadd.f32 %v322, 1.0
    %v326 = vadd.f32 %v324, 1.0
    %v327 = vrcp.pop %v325
    %v328 = vmul.f32 1.0, %v327
    %v329 = vrcp.pop %v326
    %v330 = vmul.f32 1.0, %v329
    %v331 = vtanh.pop %v317
    %v332 = vtanh.pop %v318
    %v333 = vmul.f32 %v328, %v231
    %v334 = vmul.f32 %v330, %v232
    %337 = vrot.lane.b32.xlu0 %v331, 96
    %v338 = vpop.permute.xlu0 %337
    %339 = vrot.lane.b32.xlu0 %v332, 96
    %v340 = vpop.permute.xlu0 %339
    %v343 = vmul.f32 %v328, %v338
    %v344 = vmul.f32 %v330, %v340
    %347 = vrot.lane.b32.xlu0 %v343, 16
    %v348 = vpop.permute.xlu0 %347
    %349 = vrot.lane.b32.xlu0 %v344, 16
    %v350 = vpop.permute.xlu0 %349
    %v353 = vadd.f32 %v333, %v348
    %v354 = vadd.f32 %v334, %v350
    %v355 = vtanh.pop %v353
    %v356 = vtanh.pop %v354
    %359 = vrot.lane.b32.xlu0 %v355, 32
    %v360 = vpop.permute.xlu0 %359
    %361 = vrot.lane.b32.xlu0 %v356, 32
    %v362 = vpop.permute.xlu0 %361
    %v365 = vmul.f32 %v328, %v360
    %v366 = vmul.f32 %v330, %v362
    %368 = vrot.lane.b32.xlu0 %v365, 80
    %v369 = vpop.permute.xlu0 %368
    %s371 = scalar_lea.vmem [#allocation3], 8
    %372 = vst.msk [vmem:[%s371] sm:$0xff] %vm138, %v369
    %374 = vrot.lane.b32.xlu0 %v366, 80
    %v375 = vpop.permute.xlu0 %374
    %377 = vst.msk [vmem:[#allocation4] sm:$0xff] %vm138, %v375
    %v378 = vld [vmem:[#allocation3] sm:$0xff]
    %v379 = vld [vmem:[#allocation3 + $0x8] sm:$0xff]
    %v380 = vld [vmem:[#allocation4] sm:$0xff]
    %v381 = vld [vmem:[#allocation4 + $0x8] sm:$0xff]
    %384 = vrot.lane.b32.xlu0 %v380, 16
    %v385 = vpop.permute.xlu0 %384
    %386 = vrot.lane.b32.xlu0 %v381, 16
    %v387 = vpop.permute.xlu0 %386
    %v390 = vsel %vm138, %v378, %v385
    %v391 = vsel %vm138, %v379, %v387
    %v392 = vld [vmem:[%s4] sm:$0x1]
    %v394 = vlaneseq
    %v395 = vshrl.u32 %v394, 7
    %v396 = vsub.s32 0, %v395
    %v397 = vrot.slane %v392, %v396
    %v399 = vmul.f32 %v390, %v397
    %v400 = vmul.f32 %v391, %v397
    %v401 = vsel %vm65, %v399, 0.0
    %402 = vadd.xlane.f32.xlu0 %v401
    %v403 = vpop.xlane.xlu0 %402
    %v404 = vsel %vm65, %v400, 0.0
    %405 = vadd.xlane.f32.xlu0 %v404
    %v406 = vpop.xlane.xlu0 %405
    %v407 = vld [vmem:[%s5] sm:$0x3]
    %v409 = vlaneseq
    %v410 = vshrl.u32 %v409, 7
    %v411 = vsub.s32 0, %v410
    %v412 = vrot.slane %v407, %v411
    %414 = vbcast.lane.b32.xlu0 %v412, 256
    %v415 = vpop.permute.xlu0 %414
    %v416 = vlaneseq
    %v417 = vshrl.u32 %v416, 7
    %v418 = vsub.s32 1, %v417
    %v419 = vrot.slane %v407, %v418
    %421 = vbcast.lane.b32.xlu0 %v419, 256
    %v422 = vpop.permute.xlu0 %421
    %v425 = vadd.f32 %v403, %v415
    %v426 = vadd.f32 %v406, %v422
    %429 = vset.pattern.permute.xlu0 0
    %430 = vperm.xlu0 %429, %v425
    %v431 = vpop.permute.xlu0 %430
    %432 = vset.pattern.permute.xlu0 0
    %433 = vperm.xlu0 %432, %v426
    %v434 = vpop.permute.xlu0 %433
    %v435 = vlaneseq
    %v436 = vand.u32 %v435, 127
    %v437 = vlaneseq
    %v438 = vshrl.u32 %v437, 7
    %v439 = vsub.s32 %v436, %v438
    %v440 = vrot.slane %v431, %v439
    %v441 = vlaneseq
    %v442 = vshrl.u32 %v441, 7
    %v443 = vsub.s32 %v436, %v442
    %v444 = vrot.slane %v434, %v443
    %vm445 = vcmask 1041409
    %v446 = vsel %vm445, %v444, %v440
    %vm448 = vcmask 58368
    %v449 = vsel %vm448, %v446, -inf
    %450 = vmax.xlane.f32.xlu0 %v449
    %v451 = vpop.xlane.xlu0 %450
    %v453 = vlaneseq
    %v454 = vshrl.u32 %v453, 7
    %v455 = vsub.s32 0, %v454
    %v456 = vrot.slane %v451, %v455
    %v457 = vlaneseq
    %v458 = vshrl.u32 %v457, 7
    %v459 = vsub.s32 1, %v458
    %v460 = vrot.slane %v451, %v459
    %v463 = vsub.f32 %v425, %v456
    %v464 = vsub.f32 %v426, %v460
    %v465 = vmul.f32 %v463, 1.442695
    %v466 = vpow.pop %v465
    %v467 = vmul.f32 %v464, 1.442695
    %v468 = vpow.pop %v467
    %471 = vset.pattern.permute.xlu0 0
    %472 = vperm.xlu0 %471, %v466
    %v473 = vpop.permute.xlu0 %472
    %474 = vset.pattern.permute.xlu0 0
    %475 = vperm.xlu0 %474, %v468
    %v476 = vpop.permute.xlu0 %475
    %v477 = vlaneseq
    %v478 = vshrl.u32 %v477, 7
    %v479 = vsub.s32 %v436, %v478
    %v480 = vrot.slane %v473, %v479
    %v481 = vlaneseq
    %v482 = vshrl.u32 %v481, 7
    %v483 = vsub.s32 %v436, %v482
    %v484 = vrot.slane %v476, %v483
    %v485 = vsel %vm445, %v484, %v480
    %v487 = vsel %vm448, %v485, 0.0
    %488 = vadd.xlane.f32.xlu0 %v487
    %v489 = vpop.xlane.xlu0 %488
    %v490 = vrcp.pop %v489
    %v492 = vlaneseq
    %v493 = vshrl.u32 %v492, 7
    %v494 = vsub.s32 0, %v493
    %v495 = vrot.slane %v490, %v494
    %v496 = vlaneseq
    %v497 = vshrl.u32 %v496, 7
    %v498 = vsub.s32 1, %v497
    %v499 = vrot.slane %v490, %v498
    %v502 = vmul.f32 %v466, %v495
    %v503 = vmul.f32 %v468, %v499
    %505 = vset.pattern.permute.xlu0 0
    %506 = vperm.xlu0 %505, %v502
    %v507 = vpop.permute.xlu0 %506
    %510 = vset.pattern.permute.xlu0 0
    %511 = vperm.xlu0 %510, %v503
    %v512 = vpop.permute.xlu0 %511
    %v514 = vmul.f32 %v390, %v507
    %v515 = vmul.f32 %v391, %v512
    %v516 = vsel %vm65, %v514, 0.0
    %v517 = vrot.slane %v516, 4
    %v518 = vadd.f32 %v516, %v517
    %v519 = vrot.slane %v518, 2
    %v520 = vadd.f32 %v518, %v519
    %v521 = vrot.slane %v520, 1
    %v522 = vadd.f32 %v520, %v521
    %v523 = vsel %vm65, %v515, 0.0
    %v524 = vrot.slane %v523, 4
    %v525 = vadd.f32 %v523, %v524
    %v526 = vrot.slane %v525, 2
    %v527 = vadd.f32 %v525, %v526
    %v528 = vrot.slane %v527, 1
    %v529 = vadd.f32 %v527, %v528
    %v530 = vmin.f32 %v522, 0.0
    %v531 = vmin.f32 %v529, 0.0
    %v532 = vmul.f32 %v530, 0.5
    %v533 = vmul.f32 %v531, 0.5
    %v534 = vtanh.pop %v532
    %v535 = vtanh.pop %v533
    %v536 = vmul.f32 %v530, 1.442695
    %v537 = vpow.pop %v536
    %v538 = vmul.f32 %v531, 1.442695
    %v539 = vpow.pop %v538
    %v540 = vadd.f32 %v537, 1.0
    %v541 = vadd.f32 %v539, 1.0
    %v542 = vmul.f32 %v534, %v540
    %v543 = vmul.f32 %v535, %v541
    %vm544 = vcmp.gt.f32.partialorder %v522, 0.0
    %vm545 = vcmp.gt.f32.partialorder %v529, 0.0
    %v546 = vsel %vm544, %v522, %v542
    %v547 = vsel %vm545, %v529, %v543
    %v548 = vld [vmem:[%s6] sm:$0x3]
    %v550 = vrot.slane %v548, 1
    %v553 = vmul.f32 %v546, %v548
    %v554 = vmul.f32 %v547, %v550
    %v557 = vrot.slane %v554, 7
    %v558 = vsel %vm445, %v557, %v553
    %vm560 = vcmask 254976
    %561 = vst.msk [vmem:[#allocation5] sm:$0x3] %vm560, %v558
    // Predicated region
    $region30: #{ernie_module_2_forward.1} parent=1 // pred_check
      _
    $region31: #{ernie_module_2_forward.1} parent=1 // pred_check_branch
      %563 = sbr.rel (0) target = $region33
    $region32: #{ernie_module_2_forward.1} parent=1 // pred_region
      %s565 = ssub.s32 32, 32
      %566 = vsyncadd [#allocation6], %s565
      %s568 = sshll.u32 [#allocation5], 4
      %s569 = int_to_ptr.vmem [resolvable:$true] %s568
      %571 = dma.vmem_to_hbm [thread:$0]  %s569, 32, %s7, [#allocation6]
    $region33: #{ernie_module_2_forward.1} parent=1 // pred_fallthru
      _
    // Predicated region
    $region34: #{ernie_module_2_forward.1} parent=1 // pred_check
      _
    $region35: #{ernie_module_2_forward.1} parent=1 // pred_check_branch
      %573 = sbr.rel (0) target = $region37
    $region36: #{ernie_module_2_forward.1} parent=1 // pred_region
      %574 = dma.done [#allocation6], 32
    $region37: #{ernie_module_2_forward.1} parent=1 // pred_fallthru
      _
    %575 = vsyncpa [#allocation6], 1

</llo_original>
